<compile_context>
chip_gen: v7x
topology: tpu7x:2x2x1
jax: 0.10.0
libtpu: 0.0.40
codegen_flags: <defaults>
</compile_context>

<pallas_src>
import jax
import jax.numpy as jnp
from jax.experimental import pallas as pl
from jax.experimental.pallas import tpu as pltpu


def ann_kernel(x_ref, w1_ref, b1_ref, w2_ref, b2_ref, w3_ref, b3_ref,
               w4_ref, b4_ref, o_ref):
    # Feature-major layout: every activation vreg is lane-dense (batch in lanes).
    x = x_ref[...]                                   # (3, TB)   f32
    w1 = w1_ref[...]                                 # (128, 3)  f32

    # ---- fc1 (3 -> 128) + ReLU: K=3 is degenerate for the MXU, so do it as three
    # VPU broadcast multiply-adds (outer-product style), keeping the MXU slot free.
    h = (w1[:, 0:1] * x[0:1, :]
         + w1[:, 1:2] * x[1:2, :]
         + w1[:, 2:3] * x[2:3, :])                   # (128, TB) f32, pure VPU
    h = jnp.maximum(h + b1_ref[...], 0.0)
    # TODO(synk): nn.Dropout(0.3) is identity in eval/inference mode; train-mode
    # masking is not implemented.

    # ---- fc2 (128 -> 64) + ReLU: MXU, f32 operands (kernel is DMA/store bound;
    # bf16 operands only added numerical error, not speed).
    h = jnp.dot(w2_ref[...], h, preferred_element_type=jnp.float32)   # (64, TB)
    h = jnp.maximum(h + b2_ref[...], 0.0)

    # ---- fc3 (64 -> 32) + ReLU: MXU, f32.
    h = jnp.dot(w3_ref[...], h, preferred_element_type=jnp.float32)   # (32, TB)
    h = jnp.maximum(h + b3_ref[...], 0.0)

    # ---- fc4 (32 -> 1): N=1 -> VPU elementwise multiply + XLU sublane reduce,
    # producing a lane-dense (1, TB) row for an unmasked store.
    y = jnp.sum(h * w4_ref[...], axis=0, keepdims=True) + b4_ref[...]  # (1, TB)
    o_ref[...] = y.astype(o_ref.dtype)


def ann_forward(x, params, *, tb=2048):
    """x: (B, 3) float32; params: PyTorch-shaped (out, in) weights, (out,) biases."""
    B, F = x.shape
    assert F == 3, F
    assert tb % 128 == 0, "batch tile must be a multiple of 128 lanes"

    # Pad the batch to a whole number of tiles; round n_tiles up to an even count
    # when >1 so the two v7x TensorCores get equal work on the parallel grid axis.
    n_tiles = pl.cdiv(B, tb)
    if n_tiles > 1 and n_tiles % 2 == 1:
        n_tiles += 1
    b_pad = n_tiles * tb

    # Feature-major input slab: (3, B_pad); padded batch columns are zero and the
    # corresponding outputs are sliced off below.
    x_t = jnp.pad(x, ((0, b_pad - B), (0, 0))).T              # (3, b_pad)

    w1 = params["w1"]                                         # (128, 3)
    b1 = params["b1"].reshape(-1, 1)                          # (128, 1)
    w2 = params["w2"]                                         # (64, 128)
    b2 = params["b2"].reshape(-1, 1)                          # (64, 1)
    w3 = params["w3"]                                         # (32, 64)
    b3 = params["b3"].reshape(-1, 1)                          # (32, 1)
    w4 = params["w4"].reshape(-1, 1)                          # (32, 1) column for fc4 reduce
    b4 = params["b4"].reshape(1, 1)                           # (1, 1)

    # Weights/biases: full-array blocks with constant index_map -> VMEM-resident
    # across all batch tiles (no re-DMA per grid step). Total < 100 KiB.
    resident = lambda a: pl.BlockSpec(a.shape, lambda i: (0, 0))

    out = pl.pallas_call(
        ann_kernel,
        out_shape=jax.ShapeDtypeStruct((1, b_pad), jnp.float32),
        grid=(n_tiles,),
        in_specs=[
            pl.BlockSpec((3, tb), lambda i: (0, i)),          # lane-dense x tile
            resident(w1), resident(b1),
            resident(w2), resident(b2),
            resident(w3), resident(b3),
            resident(w4), resident(b4),
        ],
        out_specs=pl.BlockSpec((1, tb), lambda i: (0, i)),    # lane-dense output row
        compiler_params=pltpu.CompilerParams(
            dimension_semantics=("parallel",),                # megacore / v7x 2-TC shard
            vmem_limit_bytes=32 * 1024 * 1024,
        ),
    )(x_t, w1, b1, w2, b2, w3, b3, w4, b4)
    return out[0, :B].reshape(B, 1)


def init_params(key):
    """Deterministic init matching PyTorch nn.Linear shapes: weight (out, in), bias (out,)."""
    dims = [(3, 128), (128, 64), (64, 32), (32, 1)]
    params = {}
    for i, (fan_in, fan_out) in enumerate(dims, start=1):
        key, kw, kb = jax.random.split(key, 3)
        bound = 1.0 / jnp.sqrt(fan_in)
        params[f"w{i}"] = jax.random.uniform(
            kw, (fan_out, fan_in), jnp.float32, -bound, bound)
        params[f"b{i}"] = jax.random.uniform(
            kb, (fan_out,), jnp.float32, -bound, bound)
    return params


def ann_reference(x, params):
    """Pure-JAX f32 reference of the same forward pass (dropout = identity)."""
    h = jnp.maximum(x @ params["w1"].T + params["b1"], 0.0)
    h = jnp.maximum(h @ params["w2"].T + params["b2"], 0.0)
    h = jnp.maximum(h @ params["w3"].T + params["b3"], 0.0)
    return h @ params["w4"].T + params["b4"]


if __name__ == "__main__":
    key = jax.random.PRNGKey(0)
    key, kx = jax.random.split(key)
    B = 300                          # deliberately not a multiple of the tile
    x = jax.random.normal(kx, (B, 3), jnp.float32)
    params = init_params(key)

    out = ann_forward(x, params, tb=256)   # pads to 512 -> 2 batch tiles (even split)
    jax.block_until_ready(out)

    ref = ann_reference(x, params)
    assert out.shape == (B, 1), out.shape
    max_err = float(jnp.max(jnp.abs(out - ref)))
    # All-f32 path; only MXU rounding on fc2/fc3 differs from the XLA reference.
    assert jnp.allclose(out, ref, atol=2e-2, rtol=2e-2), (max_err, out[:4], ref[:4])
    print("KERNEL_OK")
</pallas_src>

<mosaic_0001>
module attributes {stable_mosaic.version = 11 : i64} {
  func.func @ann_kernel(%arg0: i32, %arg1: memref<3x256xf32, #tpu.memory_space<vmem>>, %arg2: memref<128x3xf32, #tpu.memory_space<vmem>>, %arg3: memref<128x1xf32, #tpu.memory_space<vmem>>, %arg4: memref<64x128xf32, #tpu.memory_space<vmem>>, %arg5: memref<64x1xf32, #tpu.memory_space<vmem>>, %arg6: memref<32x64xf32, #tpu.memory_space<vmem>>, %arg7: memref<32x1xf32, #tpu.memory_space<vmem>>, %arg8: memref<32x1xf32, #tpu.memory_space<vmem>>, %arg9: memref<1x1xf32, #tpu.memory_space<vmem>>, %arg10: memref<1x256xf32, #tpu.memory_space<vmem>>) attributes {dimension_semantics = [#tpu.dimension_semantics<parallel>], iteration_bounds = array<i64: 2>, scalar_prefetch = 0 : i64, scratch_operands = 0 : i64, tpu.core_type = #tpu.core_type<tc>, window_params = [{transform_indices = @transform_0, window_bounds = array<i64: 3, 256>}, {pipeline_mode = #tpu.pipeline_mode<synchronous>, transform_indices = @transform_1, window_bounds = array<i64: 128, 3>}, {pipeline_mode = #tpu.pipeline_mode<synchronous>, transform_indices = @transform_2, window_bounds = array<i64: 128, 1>}, {pipeline_mode = #tpu.pipeline_mode<synchronous>, transform_indices = @transform_3, window_bounds = array<i64: 64, 128>}, {pipeline_mode = #tpu.pipeline_mode<synchronous>, transform_indices = @transform_4, window_bounds = array<i64: 64, 1>}, {pipeline_mode = #tpu.pipeline_mode<synchronous>, transform_indices = @transform_5, window_bounds = array<i64: 32, 64>}, {pipeline_mode = #tpu.pipeline_mode<synchronous>, transform_indices = @transform_6, window_bounds = array<i64: 32, 1>}, {pipeline_mode = #tpu.pipeline_mode<synchronous>, transform_indices = @transform_7, window_bounds = array<i64: 32, 1>}, {pipeline_mode = #tpu.pipeline_mode<synchronous>, transform_indices = @transform_8, window_bounds = array<i64: 1, 1>}, {transform_indices = @transform_9, window_bounds = array<i64: 1, 256>}]} {
    %c0 = arith.constant 0 : index
    %c0_0 = arith.constant 0 : index
    %0 = vector.load %arg1[%c0, %c0_0] : memref<3x256xf32, #tpu.memory_space<vmem>>, vector<3x256xf32>
    %c0_1 = arith.constant 0 : index
    %c0_2 = arith.constant 0 : index
    %1 = vector.load %arg2[%c0_1, %c0_2] : memref<128x3xf32, #tpu.memory_space<vmem>>, vector<128x3xf32>
    %2 = vector.extract_strided_slice %1 {offsets = [0, 0], sizes = [128, 1], strides = [1, 1]} : vector<128x3xf32> to vector<128x1xf32>
    %3 = vector.extract_strided_slice %0 {offsets = [0, 0], sizes = [1, 256], strides = [1, 1]} : vector<3x256xf32> to vector<1x256xf32>
    %4 = vector.broadcast %2 : vector<128x1xf32> to vector<128x256xf32>
    %5 = vector.broadcast %3 : vector<1x256xf32> to vector<128x256xf32>
    %6 = arith.mulf %4, %5 : vector<128x256xf32>
    %7 = vector.extract_strided_slice %1 {offsets = [0, 1], sizes = [128, 1], strides = [1, 1]} : vector<128x3xf32> to vector<128x1xf32>
    %8 = vector.extract_strided_slice %0 {offsets = [1, 0], sizes = [1, 256], strides = [1, 1]} : vector<3x256xf32> to vector<1x256xf32>
    %9 = vector.broadcast %7 : vector<128x1xf32> to vector<128x256xf32>
    %10 = vector.broadcast %8 : vector<1x256xf32> to vector<128x256xf32>
    %11 = arith.mulf %9, %10 : vector<128x256xf32>
    %12 = arith.addf %6, %11 : vector<128x256xf32>
    %13 = vector.extract_strided_slice %1 {offsets = [0, 2], sizes = [128, 1], strides = [1, 1]} : vector<128x3xf32> to vector<128x1xf32>
    %14 = vector.extract_strided_slice %0 {offsets = [2, 0], sizes = [1, 256], strides = [1, 1]} : vector<3x256xf32> to vector<1x256xf32>
    %15 = vector.broadcast %13 : vector<128x1xf32> to vector<128x256xf32>
    %16 = vector.broadcast %14 : vector<1x256xf32> to vector<128x256xf32>
    %17 = arith.mulf %15, %16 : vector<128x256xf32>
    %18 = arith.addf %12, %17 : vector<128x256xf32>
    %c0_3 = arith.constant 0 : index
    %c0_4 = arith.constant 0 : index
    %19 = vector.load %arg3[%c0_3, %c0_4] : memref<128x1xf32, #tpu.memory_space<vmem>>, vector<128x1xf32>
    %20 = vector.broadcast %19 : vector<128x1xf32> to vector<128x256xf32>
    %21 = arith.addf %18, %20 : vector<128x256xf32>
    %cst = arith.constant 0.000000e+00 : f32
    %22 = vector.broadcast %cst : f32 to vector<128x256xf32>
    %23 = arith.maximumf %21, %22 : vector<128x256xf32>
    %c0_5 = arith.constant 0 : index
    %c0_6 = arith.constant 0 : index
    %24 = vector.load %arg4[%c0_5, %c0_6] : memref<64x128xf32, #tpu.memory_space<vmem>>, vector<64x128xf32>
    %cst_7 = arith.constant dense<0.000000e+00> : vector<64x256xf32>
    %25 = tpu.matmul %24, %23, %cst_7 {dimension_numbers = #tpu.dot_dimension_numbers<[1], [0], [0], [1], [0, 0, 1, 1], [], []>} : vector<64x128xf32>, vector<128x256xf32>, vector<64x256xf32> -> vector<64x256xf32>
    %c0_8 = arith.constant 0 : index
    %c0_9 = arith.constant 0 : index
    %26 = vector.load %arg5[%c0_8, %c0_9] : memref<64x1xf32, #tpu.memory_space<vmem>>, vector<64x1xf32>
    %27 = vector.broadcast %26 : vector<64x1xf32> to vector<64x256xf32>
    %28 = arith.addf %25, %27 : vector<64x256xf32>
    %cst_10 = arith.constant 0.000000e+00 : f32
    %29 = vector.broadcast %cst_10 : f32 to vector<64x256xf32>
    %30 = arith.maximumf %28, %29 : vector<64x256xf32>
    %c0_11 = arith.constant 0 : index
    %c0_12 = arith.constant 0 : index
    %31 = vector.load %arg6[%c0_11, %c0_12] : memref<32x64xf32, #tpu.memory_space<vmem>>, vector<32x64xf32>
    %cst_13 = arith.constant dense<0.000000e+00> : vector<32x256xf32>
    %32 = tpu.matmul %31, %30, %cst_13 {dimension_numbers = #tpu.dot_dimension_numbers<[1], [0], [0], [1], [0, 0, 1, 1], [], []>} : vector<32x64xf32>, vector<64x256xf32>, vector<32x256xf32> -> vector<32x256xf32>
    %c0_14 = arith.constant 0 : index
    %c0_15 = arith.constant 0 : index
    %33 = vector.load %arg7[%c0_14, %c0_15] : memref<32x1xf32, #tpu.memory_space<vmem>>, vector<32x1xf32>
    %34 = vector.broadcast %33 : vector<32x1xf32> to vector<32x256xf32>
    %35 = arith.addf %32, %34 : vector<32x256xf32>
    %cst_16 = arith.constant 0.000000e+00 : f32
    %36 = vector.broadcast %cst_16 : f32 to vector<32x256xf32>
    %37 = arith.maximumf %35, %36 : vector<32x256xf32>
    %c0_17 = arith.constant 0 : index
    %c0_18 = arith.constant 0 : index
    %38 = vector.load %arg8[%c0_17, %c0_18] : memref<32x1xf32, #tpu.memory_space<vmem>>, vector<32x1xf32>
    %39 = vector.broadcast %38 : vector<32x1xf32> to vector<32x256xf32>
    %40 = arith.mulf %37, %39 : vector<32x256xf32>
    %cst_19 = arith.constant dense<0.000000e+00> : vector<256xf32>
    %41 = vector.multi_reduction <add>, %40, %cst_19 [0] : vector<32x256xf32> to vector<256xf32>
    %42 = vector.shape_cast %41 : vector<256xf32> to vector<1x256xf32>
    %c0_20 = arith.constant 0 : index
    %c0_21 = arith.constant 0 : index
    %43 = vector.load %arg9[%c0_20, %c0_21] : memref<1x1xf32, #tpu.memory_space<vmem>>, vector<1x1xf32>
    %44 = vector.broadcast %43 : vector<1x1xf32> to vector<1x256xf32>
    %45 = arith.addf %42, %44 : vector<1x256xf32>
    %c0_22 = arith.constant 0 : index
    %c0_23 = arith.constant 0 : index
    %46 = vector.load %arg10[%c0_22, %c0_23] : memref<1x256xf32, #tpu.memory_space<vmem>>, vector<1x256xf32>
    tpu.vector_store %arg10[%c0_22, %c0_23], %45 {strides = array<i32>} : memref<1x256xf32, #tpu.memory_space<vmem>>, vector<1x256xf32>,
    return
  }
  func.func @transform_0(%arg0: i32) -> (i32, i32) {
    %c0_i32 = arith.constant 0 : i32
    %c0_i32_0 = arith.constant 0 : i32
    return %c0_i32, %arg0 : i32, i32
  }
  func.func @transform_1(%arg0: i32) -> (i32, i32) {
    %c0_i32 = arith.constant 0 : i32
    %c0_i32_0 = arith.constant 0 : i32
    %c0_i32_1 = arith.constant 0 : i32
    return %c0_i32, %c0_i32_0 : i32, i32
  }
  func.func @transform_2(%arg0: i32) -> (i32, i32) {
    %c0_i32 = arith.constant 0 : i32
    %c0_i32_0 = arith.constant 0 : i32
    %c0_i32_1 = arith.constant 0 : i32
    return %c0_i32, %c0_i32_0 : i32, i32
  }
  func.func @transform_3(%arg0: i32) -> (i32, i32) {
    %c0_i32 = arith.constant 0 : i32
    %c0_i32_0 = arith.constant 0 : i32
    %c0_i32_1 = arith.constant 0 : i32
    return %c0_i32, %c0_i32_0 : i32, i32
  }
  func.func @transform_4(%arg0: i32) -> (i32, i32) {
    %c0_i32 = arith.constant 0 : i32
    %c0_i32_0 = arith.constant 0 : i32
    %c0_i32_1 = arith.constant 0 : i32
    return %c0_i32, %c0_i32_0 : i32, i32
  }
  func.func @transform_5(%arg0: i32) -> (i32, i32) {
    %c0_i32 = arith.constant 0 : i32
    %c0_i32_0 = arith.constant 0 : i32
    %c0_i32_1 = arith.constant 0 : i32
    return %c0_i32, %c0_i32_0 : i32, i32
  }
  func.func @transform_6(%arg0: i32) -> (i32, i32) {
    %c0_i32 = arith.constant 0 : i32
    %c0_i32_0 = arith.constant 0 : i32
    %c0_i32_1 = arith.constant 0 : i32
    return %c0_i32, %c0_i32_0 : i32, i32
  }
  func.func @transform_7(%arg0: i32) -> (i32, i32) {
    %c0_i32 = arith.constant 0 : i32
    %c0_i32_0 = arith.constant 0 : i32
    %c0_i32_1 = arith.constant 0 : i32
    return %c0_i32, %c0_i32_0 : i32, i32
  }
  func.func @transform_8(%arg0: i32) -> (i32, i32) {
    %c0_i32 = arith.constant 0 : i32
    %c0_i32_0 = arith.constant 0 : i32
    %c0_i32_1 = arith.constant 0 : i32
    return %c0_i32, %c0_i32_0 : i32, i32
  }
  func.func @transform_9(%arg0: i32) -> (i32, i32) {
    %c0_i32 = arith.constant 0 : i32
    %c0_i32_0 = arith.constant 0 : i32
    return %c0_i32, %arg0 : i32, i32
  }
}

</mosaic_0001>

<llo_original>
// kernel: tpu_custom_call.1
$region0: #{tpu_custom_call.1}
  #allocation0 [shape = 'u32[]', space=smem, size = 0x4, offset = 0x4, fixed_abs, tag = 'smem constant byte address 0x4 - core index']
  #allocation1 [shape = 'u32[144,128]{1,0:T(1,128)}', space=vmem, size = 0x12000, scoped, tag = 'internal scratch']
  #allocation2 [shape = 'f32[1,1]{1,0:T(1,128)S(1)}', space=vmem, size = 0x200, scoped, tag = 'scoped memory for tpu_custom_call.1']
  %s0 = inlined_call_operand.vmem [shape: f32[3,512], index: 0, kind: input, shape index: {}]
  %s1 = inlined_call_operand.vmem [shape: f32[128,3], index: 1, kind: input, shape index: {}]
  %s2 = inlined_call_operand.vmem [shape: f32[128,1], index: 2, kind: input, shape index: {}]
  %s3 = inlined_call_operand.vmem [shape: f32[64,128], index: 3, kind: input, shape index: {}]
  %s4 = inlined_call_operand.vmem [shape: f32[64,1], index: 4, kind: input, shape index: {}]
  %s5 = inlined_call_operand.vmem [shape: f32[32,64], index: 5, kind: input, shape index: {}]
  %s6 = inlined_call_operand.vmem [shape: f32[32,1], index: 6, kind: input, shape index: {}]
  %s7 = inlined_call_operand.vmem [shape: f32[32,1], index: 7, kind: input, shape index: {}]
  %s8 = inlined_call_operand.<no memory space> [shape: f32[1,1], index: 8, kind: input, shape index: {}]
  %s9 = inlined_call_operand.hbm [shape: f32[1,512], index: 9, kind: output, shape index: {}]
  %s10 = sld [smem:[#allocation0]]
  $region69: #{tpu_custom_call.1} parent=0
    _
  %s12 = ssub.s32 1, %s10
  %s13 = scalar_select 0, %s12, %s10
  %v14 = vstv %s8
  %15 = vst [vmem:[#allocation2] sm:$0x1] %v14
  $region1: #{tpu_custom_call.1} parent=0
    #allocation3 [shape = 'u8[2048]{0}', space=vmem, size = 0x800, scoped, tag = 'output window, operand 0']
    #allocation4 [shape = 's32[2]{0}', space=sflag, size = 0x8, scoped, tag = 'scoped memory for tpu_custom_call.1']
    %16 = vsyncpa [#allocation4], 0
    %s17 = scalar_lea.sflag [#allocation4], 1
    %18 = vsyncpa %s17, 0
    loop: start=0, step=1, limit=4
    $region2: #{tpu_custom_call.1} parent=1 // loop_pre_header
      _
    $region3: #{tpu_custom_call.1} parent=1 // loop_header
      %s20 = sphi 0, %s24
      %p21 = scmp.ge.s32.totalorder %s20, 4
      %s30 = sphi 0, %s32
      %s33 = sphi 0, %s30
      %s34 = sphi 0, %s33
      %s50 = sphi 0, %s34
      %s54 = sphi 0, %s54
      %s56 = sphi 0, %s54
      %s57 = sphi 0, %s56
      %s71 = sphi 0, %s57
      %s75 = sphi 0, %s75
      %s77 = sphi 0, %s75
      %s78 = sphi 0, %s77
      %s92 = sphi 0, %s78
      %s96 = sphi 0, %s96
      %s98 = sphi 0, %s96
      %s99 = sphi 0, %s98
      %s113 = sphi 0, %s99
      %s117 = sphi 0, %s117
      %s119 = sphi 0, %s117
      %s120 = sphi 0, %s119
      %s134 = sphi 0, %s120
      %s138 = sphi 0, %s138
      %s140 = sphi 0, %s138
      %s141 = sphi 0, %s140
      %s155 = sphi 0, %s141
      %s159 = sphi 0, %s159
      %s161 = sphi 0, %s159
      %s162 = sphi 0, %s161
      %s176 = sphi 0, %s162
      %s180 = sphi 0, %s180
      %s182 = sphi 0, %s180
      %s183 = sphi 0, %s182
      %s197 = sphi 0, %s183
      %s201 = sphi 0, %s201
      %s203 = sphi 0, %s201
      %s204 = sphi 0, %s203
      %s218 = sphi 0, %s204
      %s224 = sphi 0, %s226
      %s227 = sphi 0, %s224
      %s228 = sphi 0, %s227
      %s244 = sphi 0, %s228
    $region4: #{tpu_custom_call.1} parent=1 // loop_header_branch
      %23 = sbr.rel (%p21) target = $region8
    $region5: #{tpu_custom_call.1} parent=1 // loop_body
      %s25 = ssub.s32 %s20, 1
      %s26 = ssub.s32 %s20, 2
      %s27 = sadd.s32 %s20, 1
      %s28 = ssub.s32 %s20, %s27
      %p29 = scmp.eq.s32.totalorder %s28, 0
      %s31 = sadd.s32 %s30, 1
      %s32 = scalar_select %p29, %s30, %s31
      %p35 = pneg %p29
      %p36 = scmp.eq.s32.totalorder %s20, 1
      %p37 = por %p35, %p36
      %p38 = scmp.ne.s32.totalorder %s30, %s33
      %p39 = scmp.eq.s32.totalorder %s20, 0
      %p40 = por %p38, %p39
      %p41 = scmp.ne.s32.totalorder %s30, %s33
      %p42 = scmp.eq.s32.totalorder %s25, 1
      %p43 = por %p41, %p42
      %p44 = scmp.ne.s32.totalorder %s33, %s34
      %p45 = scmp.eq.s32.totalorder %s25, 0
      %p46 = por %p44, %p45
      %p47 = scmp.ne.s32.totalorder %s33, %s34
      %p48 = scmp.eq.s32.totalorder %s26, 1
      %p49 = por %p47, %p48
      %p51 = scmp.ne.s32.totalorder %s34, %s50
      %p52 = scmp.eq.s32.totalorder %s26, 0
      %p53 = por %p51, %p52
      %s55 = sadd.s32 %s54, 1
      %p58 = scmp.eq.s32.totalorder %s20, 1
      %p59 = scmp.ne.s32.totalorder %s54, %s56
      %p60 = scmp.eq.s32.totalorder %s20, 0
      %p61 = por %p59, %p60
      %p62 = scmp.ne.s32.totalorder %s54, %s56
      %p63 = scmp.eq.s32.totalorder %s25, 1
      %p64 = por %p62, %p63
      %p65 = scmp.ne.s32.totalorder %s56, %s57
      %p66 = scmp.eq.s32.totalorder %s25, 0
      %p67 = por %p65, %p66
      %p68 = scmp.ne.s32.totalorder %s56, %s57
      %p69 = scmp.eq.s32.totalorder %s26, 1
      %p70 = por %p68, %p69
      %p72 = scmp.ne.s32.totalorder %s57, %s71
      %p73 = scmp.eq.s32.totalorder %s26, 0
      %p74 = por %p72, %p73
      %s76 = sadd.s32 %s75, 1
      %p79 = scmp.eq.s32.totalorder %s20, 1
      %p80 = scmp.ne.s32.totalorder %s75, %s77
      %p81 = scmp.eq.s32.totalorder %s20, 0
      %p82 = por %p80, %p81
      %p83 = scmp.ne.s32.totalorder %s75, %s77
      %p84 = scmp.eq.s32.totalorder %s25, 1
      %p85 = por %p83, %p84
      %p86 = scmp.ne.s32.totalorder %s77, %s78
      %p87 = scmp.eq.s32.totalorder %s25, 0
      %p88 = por %p86, %p87
      %p89 = scmp.ne.s32.totalorder %s77, %s78
      %p90 = scmp.eq.s32.totalorder %s26, 1
      %p91 = por %p89, %p90
      %p93 = scmp.ne.s32.totalorder %s78, %s92
      %p94 = scmp.eq.s32.totalorder %s26, 0
      %p95 = por %p93, %p94
      %s97 = sadd.s32 %s96, 1
      %p100 = scmp.eq.s32.totalorder %s20, 1
      %p101 = scmp.ne.s32.totalorder %s96, %s98
      %p102 = scmp.eq.s32.totalorder %s20, 0
      %p103 = por %p101, %p102
      %p104 = scmp.ne.s32.totalorder %s96, %s98
      %p105 = scmp.eq.s32.totalorder %s25, 1
      %p106 = por %p104, %p105
      %p107 = scmp.ne.s32.totalorder %s98, %s99
      %p108 = scmp.eq.s32.totalorder %s25, 0
      %p109 = por %p107, %p108
      %p110 = scmp.ne.s32.totalorder %s98, %s99
      %p111 = scmp.eq.s32.totalorder %s26, 1
      %p112 = por %p110, %p111
      %p114 = scmp.ne.s32.totalorder %s99, %s113
      %p115 = scmp.eq.s32.totalorder %s26, 0
      %p116 = por %p114, %p115
      %s118 = sadd.s32 %s117, 1
      %p121 = scmp.eq.s32.totalorder %s20, 1
      %p122 = scmp.ne.s32.totalorder %s117, %s119
      %p123 = scmp.eq.s32.totalorder %s20, 0
      %p124 = por %p122, %p123
      %p125 = scmp.ne.s32.totalorder %s117, %s119
      %p126 = scmp.eq.s32.totalorder %s25, 1
      %p127 = por %p125, %p126
      %p128 = scmp.ne.s32.totalorder %s119, %s120
      %p129 = scmp.eq.s32.totalorder %s25, 0
      %p130 = por %p128, %p129
      %p131 = scmp.ne.s32.totalorder %s119, %s120
      %p132 = scmp.eq.s32.totalorder %s26, 1
      %p133 = por %p131, %p132
      %p135 = scmp.ne.s32.totalorder %s120, %s134
      %p136 = scmp.eq.s32.totalorder %s26, 0
      %p137 = por %p135, %p136
      %s139 = sadd.s32 %s138, 1
      %p142 = scmp.eq.s32.totalorder %s20, 1
      %p143 = scmp.ne.s32.totalorder %s138, %s140
      %p144 = scmp.eq.s32.totalorder %s20, 0
      %p145 = por %p143, %p144
      %p146 = scmp.ne.s32.totalorder %s138, %s140
      %p147 = scmp.eq.s32.totalorder %s25, 1
      %p148 = por %p146, %p147
      %p149 = scmp.ne.s32.totalorder %s140, %s141
      %p150 = scmp.eq.s32.totalorder %s25, 0
      %p151 = por %p149, %p150
      %p152 = scmp.ne.s32.totalorder %s140, %s141
      %p153 = scmp.eq.s32.totalorder %s26, 1
      %p154 = por %p152, %p153
      %p156 = scmp.ne.s32.totalorder %s141, %s155
      %p157 = scmp.eq.s32.totalorder %s26, 0
      %p158 = por %p156, %p157
      %s160 = sadd.s32 %s159, 1
      %p163 = scmp.eq.s32.totalorder %s20, 1
      %p164 = scmp.ne.s32.totalorder %s159, %s161
      %p165 = scmp.eq.s32.totalorder %s20, 0
      %p166 = por %p164, %p165
      %p167 = scmp.ne.s32.totalorder %s159, %s161
      %p168 = scmp.eq.s32.totalorder %s25, 1
      %p169 = por %p167, %p168
      %p170 = scmp.ne.s32.totalorder %s161, %s162
      %p171 = scmp.eq.s32.totalorder %s25, 0
      %p172 = por %p170, %p171
      %p173 = scmp.ne.s32.totalorder %s161, %s162
      %p174 = scmp.eq.s32.totalorder %s26, 1
      %p175 = por %p173, %p174
      %p177 = scmp.ne.s32.totalorder %s162, %s176
      %p178 = scmp.eq.s32.totalorder %s26, 0
      %p179 = por %p177, %p178
      %s181 = sadd.s32 %s180, 1
      %p184 = scmp.eq.s32.totalorder %s20, 1
      %p185 = scmp.ne.s32.totalorder %s180, %s182
      %p186 = scmp.eq.s32.totalorder %s20, 0
      %p187 = por %p185, %p186
      %p188 = scmp.ne.s32.totalorder %s180, %s182
      %p189 = scmp.eq.s32.totalorder %s25, 1
      %p190 = por %p188, %p189
      %p191 = scmp.ne.s32.totalorder %s182, %s183
      %p192 = scmp.eq.s32.totalorder %s25, 0
      %p193 = por %p191, %p192
      %p194 = scmp.ne.s32.totalorder %s182, %s183
      %p195 = scmp.eq.s32.totalorder %s26, 1
      %p196 = por %p194, %p195
      %p198 = scmp.ne.s32.totalorder %s183, %s197
      %p199 = scmp.eq.s32.totalorder %s26, 0
      %p200 = por %p198, %p199
      %s202 = sadd.s32 %s201, 1
      %p205 = scmp.eq.s32.totalorder %s20, 1
      %p206 = scmp.ne.s32.totalorder %s201, %s203
      %p207 = scmp.eq.s32.totalorder %s20, 0
      %p208 = por %p206, %p207
      %p209 = scmp.ne.s32.totalorder %s201, %s203
      %p210 = scmp.eq.s32.totalorder %s25, 1
      %p211 = por %p209, %p210
      %p212 = scmp.ne.s32.totalorder %s203, %s204
      %p213 = scmp.eq.s32.totalorder %s25, 0
      %p214 = por %p212, %p213
      %p215 = scmp.ne.s32.totalorder %s203, %s204
      %p216 = scmp.eq.s32.totalorder %s26, 1
      %p217 = por %p215, %p216
      %p219 = scmp.ne.s32.totalorder %s204, %s218
      %p220 = scmp.eq.s32.totalorder %s26, 0
      %p221 = por %p219, %p220
      %s222 = ssub.s32 %s20, %s27
      %p223 = scmp.eq.s32.totalorder %s222, 0
      %s225 = sadd.s32 %s224, 1
      %s226 = scalar_select %p223, %s224, %s225
      %p229 = pneg %p223
      %p230 = scmp.eq.s32.totalorder %s20, 1
      %p231 = por %p229, %p230
      %p232 = scmp.ne.s32.totalorder %s224, %s227
      %p233 = scmp.eq.s32.totalorder %s20, 0
      %p234 = por %p232, %p233
      %p235 = scmp.ne.s32.totalorder %s224, %s227
      %p236 = scmp.eq.s32.totalorder %s25, 1
      %p237 = por %p235, %p236
      %p238 = scmp.ne.s32.totalorder %s227, %s228
      %p239 = scmp.eq.s32.totalorder %s25, 0
      %p240 = por %p238, %p239
      %p241 = scmp.ne.s32.totalorder %s227, %s228
      %p242 = scmp.eq.s32.totalorder %s26, 1
      %p243 = por %p241, %p242
      %p245 = scmp.ne.s32.totalorder %s228, %s244
      %p246 = scmp.eq.s32.totalorder %s26, 0
      %p247 = por %p245, %p246
      %p248 = scmp.le.s32.totalorder 1, %s20
      %p249 = scmp.lt.s32.totalorder %s20, 3
      %p250 = pnand %p248, %p249
      %p251 = pneg %p250
      // Predicated region
      $region9: #{tpu_custom_call.1} parent=5 // pred_check
        _
      $region10: #{tpu_custom_call.1} parent=5 // pred_check_branch
        %253 = sbr.rel (%p250) target = $region12
      $region11: #{tpu_custom_call.1} parent=5 // pred_region
        %s254 = ssub.s32 %s20, 1
        // Predicated region
        $region13: #{tpu_custom_call.1} parent=11 // pred_check
          %p255 = pneg %p67
        $region14: #{tpu_custom_call.1} parent=11 // pred_check_branch
          %257 = sbr.rel (%p255) target = $region16
        $region15: #{tpu_custom_call.1} parent=11 // pred_region
          _
        $region16: #{tpu_custom_call.1} parent=11 // pred_fallthru
          _
        // Predicated region
        $region17: #{tpu_custom_call.1} parent=11 // pred_check
          %p258 = pneg %p88
        $region18: #{tpu_custom_call.1} parent=11 // pred_check_branch
          %260 = sbr.rel (%p258) target = $region20
        $region19: #{tpu_custom_call.1} parent=11 // pred_region
          _
        $region20: #{tpu_custom_call.1} parent=11 // pred_fallthru
          _
        // Predicated region
        $region21: #{tpu_custom_call.1} parent=11 // pred_check
          %p261 = pneg %p109
        $region22: #{tpu_custom_call.1} parent=11 // pred_check_branch
          %263 = sbr.rel (%p261) target = $region24
        $region23: #{tpu_custom_call.1} parent=11 // pred_region
          _
        $region24: #{tpu_custom_call.1} parent=11 // pred_fallthru
          _
        // Predicated region
        $region25: #{tpu_custom_call.1} parent=11 // pred_check
          %p264 = pneg %p130
        $region26: #{tpu_custom_call.1} parent=11 // pred_check_branch
          %266 = sbr.rel (%p264) target = $region28
        $region27: #{tpu_custom_call.1} parent=11 // pred_region
          _
        $region28: #{tpu_custom_call.1} parent=11 // pred_fallthru
          _
        // Predicated region
        $region29: #{tpu_custom_call.1} parent=11 // pred_check
          %p267 = pneg %p151
        $region30: #{tpu_custom_call.1} parent=11 // pred_check_branch
          %269 = sbr.rel (%p267) target = $region32
        $region31: #{tpu_custom_call.1} parent=11 // pred_region
          _
        $region32: #{tpu_custom_call.1} parent=11 // pred_fallthru
          _
        // Predicated region
        $region33: #{tpu_custom_call.1} parent=11 // pred_check
          %p270 = pneg %p172
        $region34: #{tpu_custom_call.1} parent=11 // pred_check_branch
          %272 = sbr.rel (%p270) target = $region36
        $region35: #{tpu_custom_call.1} parent=11 // pred_region
          _
        $region36: #{tpu_custom_call.1} parent=11 // pred_fallthru
          _
        // Predicated region
        $region37: #{tpu_custom_call.1} parent=11 // pred_check
          %p273 = pneg %p193
        $region38: #{tpu_custom_call.1} parent=11 // pred_check_branch
          %275 = sbr.rel (%p273) target = $region40
        $region39: #{tpu_custom_call.1} parent=11 // pred_region
          _
        $region40: #{tpu_custom_call.1} parent=11 // pred_fallthru
          _
        // Predicated region
        $region41: #{tpu_custom_call.1} parent=11 // pred_check
          %p276 = pneg %p214
        $region42: #{tpu_custom_call.1} parent=11 // pred_check_branch
          %278 = sbr.rel (%p276) target = $region44
        $region43: #{tpu_custom_call.1} parent=11 // pred_region
          _
        $region44: #{tpu_custom_call.1} parent=11 // pred_fallthru
          _
      $region12: #{tpu_custom_call.1} parent=5 // pred_fallthru
        _
      %p279 = scmp.lt.s32.totalorder %s20, 2
      // Predicated region
      $region45: #{tpu_custom_call.1} parent=5 // pred_check
        %p280 = pneg %p279
      $region46: #{tpu_custom_call.1} parent=5 // pred_check_branch
        %282 = sbr.rel (%p280) target = $region48
      $region47: #{tpu_custom_call.1} parent=5 // pred_region
        // Predicated region
        $region49: #{tpu_custom_call.1} parent=47 // pred_check
          %p283 = pneg %p40
        $region50: #{tpu_custom_call.1} parent=47 // pred_check_branch
          %285 = sbr.rel (%p283) target = $region52
        $region51: #{tpu_custom_call.1} parent=47 // pred_region
          %s286 = smul.u32 2, %s20
          %p287 = scmp.lt.s32.totalorder %s286, 3
          %s288 = scalar_select %p287, %s286, 3
          %s289 = smul.addr %s288, 4
          %s290 = scalar_lea.vmem %s0, %s289
          %s291 = smul.u32 2, %s20
        $region52: #{tpu_custom_call.1} parent=47 // pred_fallthru
          _
      $region48: #{tpu_custom_call.1} parent=5 // pred_fallthru
        _
      %p292 = scmp.le.s32.totalorder 1, %s20
      %p293 = scmp.lt.s32.totalorder %s20, 3
      %p294 = pnand %p292, %p293
      %p295 = pneg %p294
      // Predicated region
      $region53: #{tpu_custom_call.1} parent=5 // pred_check
        _
      $region54: #{tpu_custom_call.1} parent=5 // pred_check_branch
        %297 = sbr.rel (%p294) target = $region56
      $region55: #{tpu_custom_call.1} parent=5 // pred_region
        %s298 = ssub.s32 %s20, 1
        %s299 = smul.u32 2, %s25
        %p300 = scmp.lt.s32.totalorder %s299, 3
        %s301 = scalar_select %p300, %s299, 3
        %s302 = smul.addr %s301, 4
        %s303 = scalar_lea.vmem %s0, %s302
        %p304 = pneg %p46
        %p305 = pneg %p43
        %p306 = pneg %p67
        %p307 = pneg %p64
        %p308 = pneg %p88
        %p309 = pneg %p85
        %p310 = pneg %p109
        %p311 = pneg %p106
        %p312 = pneg %p130
        %p313 = pneg %p127
        %p314 = pneg %p151
        %p315 = pneg %p148
        %p316 = pneg %p172
        %p317 = pneg %p169
        %p318 = pneg %p193
        %p319 = pneg %p190
        %p320 = pneg %p214
        %p321 = pneg %p211
        %p322 = pneg %p240
        %p323 = pneg %p237
        %s324 = sand.u32 %s227, 1
        %s325 = scalar_lea.sflag [#allocation4], %s324
        %s326 = sand.u32 %s227, 1
        %s327 = smul.addr %s326, 2
        %s328 = scalar_lea.vmem [#allocation3], %s327
        %s329 = smul.u32 2, %s25
        %p330 = scmp.lt.s32.totalorder %s329, 3
        %s331 = scalar_select %p330, %s329, 3
        %s332 = smul.addr %s331, 4
        %s333 = scalar_lea.vmem %s0, %s332
        %s334 = smul.u32 2, %s25
        %s335 = smul.u32 2, %s25
        %v336 = vld [vmem:[%s333] sm:$0x77]
        %v337 = vld [vmem:[%s1] sm:$0xff]
        %v338 = vld [vmem:[%s1 + $0x8] sm:$0xff]
        %v339 = vld [vmem:[%s1 + $0x10] sm:$0xff]
        %v340 = vld [vmem:[%s1 + $0x18] sm:$0xff]
        %v341 = vld [vmem:[%s1 + $0x20] sm:$0xff]
        %v342 = vld [vmem:[%s1 + $0x28] sm:$0xff]
        %v343 = vld [vmem:[%s1 + $0x30] sm:$0xff]
        %v344 = vld [vmem:[%s1 + $0x38] sm:$0xff]
        %v345 = vld [vmem:[%s1 + $0x40] sm:$0xff]
        %v346 = vld [vmem:[%s1 + $0x48] sm:$0xff]
        %v347 = vld [vmem:[%s1 + $0x50] sm:$0xff]
        %v348 = vld [vmem:[%s1 + $0x58] sm:$0xff]
        %v349 = vld [vmem:[%s1 + $0x60] sm:$0xff]
        %v350 = vld [vmem:[%s1 + $0x68] sm:$0xff]
        %v351 = vld [vmem:[%s1 + $0x70] sm:$0xff]
        %v352 = vld [vmem:[%s1 + $0x78] sm:$0xff]
        %354 = vset.pattern.permute.xlu0 0
        %355 = vperm.xlu0 %354, %v337
        %v356 = vpop.permute.xlu0 %355
        %359 = vset.pattern.permute.xlu0 0
        %360 = vperm.xlu0 %359, %v338
        %v361 = vpop.permute.xlu0 %360
        %364 = vset.pattern.permute.xlu0 0
        %365 = vperm.xlu0 %364, %v339
        %v366 = vpop.permute.xlu0 %365
        %369 = vset.pattern.permute.xlu0 0
        %370 = vperm.xlu0 %369, %v340
        %v371 = vpop.permute.xlu0 %370
        %374 = vset.pattern.permute.xlu0 0
        %375 = vperm.xlu0 %374, %v341
        %v376 = vpop.permute.xlu0 %375
        %379 = vset.pattern.permute.xlu0 0
        %380 = vperm.xlu0 %379, %v342
        %v381 = vpop.permute.xlu0 %380
        %384 = vset.pattern.permute.xlu0 0
        %385 = vperm.xlu0 %384, %v343
        %v386 = vpop.permute.xlu0 %385
        %389 = vset.pattern.permute.xlu0 0
        %390 = vperm.xlu0 %389, %v344
        %v391 = vpop.permute.xlu0 %390
        %394 = vset.pattern.permute.xlu0 0
        %395 = vperm.xlu0 %394, %v345
        %v396 = vpop.permute.xlu0 %395
        %399 = vset.pattern.permute.xlu0 0
        %400 = vperm.xlu0 %399, %v346
        %v401 = vpop.permute.xlu0 %400
        %404 = vset.pattern.permute.xlu0 0
        %405 = vperm.xlu0 %404, %v347
        %v406 = vpop.permute.xlu0 %405
        %409 = vset.pattern.permute.xlu0 0
        %410 = vperm.xlu0 %409, %v348
        %v411 = vpop.permute.xlu0 %410
        %414 = vset.pattern.permute.xlu0 0
        %415 = vperm.xlu0 %414, %v349
        %v416 = vpop.permute.xlu0 %415
        %419 = vset.pattern.permute.xlu0 0
        %420 = vperm.xlu0 %419, %v350
        %v421 = vpop.permute.xlu0 %420
        %424 = vset.pattern.permute.xlu0 0
        %425 = vperm.xlu0 %424, %v351
        %v426 = vpop.permute.xlu0 %425
        %429 = vset.pattern.permute.xlu0 0
        %430 = vperm.xlu0 %429, %v352
        %v431 = vpop.permute.xlu0 %430
        %v434 = vlaneseq
        %v435 = vshrl.u32 %v434, 7
        %v436 = vsub.s32 0, %v435
        %v437 = vrot.slane %v336, %v436
        %v438 = vlaneseq
        %v439 = vshrl.u32 %v438, 7
        %v440 = vsub.s32 4, %v439
        %v441 = vrot.slane %v336, %v440
        %v444 = vlaneseq
        %v445 = vshrl.u32 %v444, 7
        %v446 = vsub.s32 0, %v445
        %v447 = vrot.slane %v437, %v446
        %v448 = vlaneseq
        %v449 = vshrl.u32 %v448, 7
        %v450 = vsub.s32 0, %v449
        %v451 = vrot.slane %v441, %v450
        %v452 = vmul.f32 %v356, %v447
        %v453 = vmul.f32 %v356, %v451
        %v454 = vmul.f32 %v361, %v447
        %v455 = vmul.f32 %v361, %v451
        %v456 = vmul.f32 %v366, %v447
        %v457 = vmul.f32 %v366, %v451
        %v458 = vmul.f32 %v371, %v447
        %v459 = vmul.f32 %v371, %v451
        %v460 = vmul.f32 %v376, %v447
        %v461 = vmul.f32 %v376, %v451
        %v462 = vmul.f32 %v381, %v447
        %v463 = vmul.f32 %v381, %v451
        %v464 = vmul.f32 %v386, %v447
        %v465 = vmul.f32 %v386, %v451
        %v466 = vmul.f32 %v391, %v447
        %v467 = vmul.f32 %v391, %v451
        %v468 = vmul.f32 %v396, %v447
        %v469 = vmul.f32 %v396, %v451
        %v470 = vmul.f32 %v401, %v447
        %v471 = vmul.f32 %v401, %v451
        %v472 = vmul.f32 %v406, %v447
        %v473 = vmul.f32 %v406, %v451
        %v474 = vmul.f32 %v411, %v447
        %v475 = vmul.f32 %v411, %v451
        %v476 = vmul.f32 %v416, %v447
        %v477 = vmul.f32 %v416, %v451
        %v478 = vmul.f32 %v421, %v447
        %v479 = vmul.f32 %v421, %v451
        %v480 = vmul.f32 %v426, %v447
        %v481 = vmul.f32 %v426, %v451
        %v482 = vmul.f32 %v431, %v447
        %v483 = vmul.f32 %v431, %v451
        %484 = vset.pattern.permute.xlu0 1
        %485 = vperm.xlu0 %484, %v337
        %v486 = vpop.permute.xlu0 %485
        %488 = vset.pattern.permute.xlu0 1
        %489 = vperm.xlu0 %488, %v338
        %v490 = vpop.permute.xlu0 %489
        %492 = vset.pattern.permute.xlu0 1
        %493 = vperm.xlu0 %492, %v339
        %v494 = vpop.permute.xlu0 %493
        %496 = vset.pattern.permute.xlu0 1
        %497 = vperm.xlu0 %496, %v340
        %v498 = vpop.permute.xlu0 %497
        %500 = vset.pattern.permute.xlu0 1
        %501 = vperm.xlu0 %500, %v341
        %v502 = vpop.permute.xlu0 %501
        %504 = vset.pattern.permute.xlu0 1
        %505 = vperm.xlu0 %504, %v342
        %v506 = vpop.permute.xlu0 %505
        %508 = vset.pattern.permute.xlu0 1
        %509 = vperm.xlu0 %508, %v343
        %v510 = vpop.permute.xlu0 %509
        %512 = vset.pattern.permute.xlu0 1
        %513 = vperm.xlu0 %512, %v344
        %v514 = vpop.permute.xlu0 %513
        %516 = vset.pattern.permute.xlu0 1
        %517 = vperm.xlu0 %516, %v345
        %v518 = vpop.permute.xlu0 %517
        %520 = vset.pattern.permute.xlu0 1
        %521 = vperm.xlu0 %520, %v346
        %v522 = vpop.permute.xlu0 %521
        %524 = vset.pattern.permute.xlu0 1
        %525 = vperm.xlu0 %524, %v347
        %v526 = vpop.permute.xlu0 %525
        %528 = vset.pattern.permute.xlu0 1
        %529 = vperm.xlu0 %528, %v348
        %v530 = vpop.permute.xlu0 %529
        %532 = vset.pattern.permute.xlu0 1
        %533 = vperm.xlu0 %532, %v349
        %v534 = vpop.permute.xlu0 %533
        %536 = vset.pattern.permute.xlu0 1
        %537 = vperm.xlu0 %536, %v350
        %v538 = vpop.permute.xlu0 %537
        %540 = vset.pattern.permute.xlu0 1
        %541 = vperm.xlu0 %540, %v351
        %v542 = vpop.permute.xlu0 %541
        %544 = vset.pattern.permute.xlu0 1
        %545 = vperm.xlu0 %544, %v352
        %v546 = vpop.permute.xlu0 %545
        %v548 = vlaneseq
        %v549 = vshrl.u32 %v548, 7
        %v550 = vsub.s32 1, %v549
        %v551 = vrot.slane %v336, %v550
        %v552 = vlaneseq
        %v553 = vshrl.u32 %v552, 7
        %v554 = vsub.s32 5, %v553
        %v555 = vrot.slane %v336, %v554
        %v558 = vlaneseq
        %v559 = vshrl.u32 %v558, 7
        %v560 = vsub.s32 1, %v559
        %v561 = vrot.slane %v551, %v560
        %v562 = vlaneseq
        %v563 = vshrl.u32 %v562, 7
        %v564 = vsub.s32 1, %v563
        %v565 = vrot.slane %v555, %v564
        %v566 = vmul.f32 %v486, %v561
        %v567 = vmul.f32 %v486, %v565
        %v568 = vmul.f32 %v490, %v561
        %v569 = vmul.f32 %v490, %v565
        %v570 = vmul.f32 %v494, %v561
        %v571 = vmul.f32 %v494, %v565
        %v572 = vmul.f32 %v498, %v561
        %v573 = vmul.f32 %v498, %v565
        %v574 = vmul.f32 %v502, %v561
        %v575 = vmul.f32 %v502, %v565
        %v576 = vmul.f32 %v506, %v561
        %v577 = vmul.f32 %v506, %v565
        %v578 = vmul.f32 %v510, %v561
        %v579 = vmul.f32 %v510, %v565
        %v580 = vmul.f32 %v514, %v561
        %v581 = vmul.f32 %v514, %v565
        %v582 = vmul.f32 %v518, %v561
        %v583 = vmul.f32 %v518, %v565
        %v584 = vmul.f32 %v522, %v561
        %v585 = vmul.f32 %v522, %v565
        %v586 = vmul.f32 %v526, %v561
        %v587 = vmul.f32 %v526, %v565
        %v588 = vmul.f32 %v530, %v561
        %v589 = vmul.f32 %v530, %v565
        %v590 = vmul.f32 %v534, %v561
        %v591 = vmul.f32 %v534, %v565
        %v592 = vmul.f32 %v538, %v561
        %v593 = vmul.f32 %v538, %v565
        %v594 = vmul.f32 %v542, %v561
        %v595 = vmul.f32 %v542, %v565
        %v596 = vmul.f32 %v546, %v561
        %v597 = vmul.f32 %v546, %v565
        %v598 = vadd.f32 %v452, %v566
        %v599 = vadd.f32 %v453, %v567
        %v600 = vadd.f32 %v454, %v568
        %v601 = vadd.f32 %v455, %v569
        %v602 = vadd.f32 %v456, %v570
        %v603 = vadd.f32 %v457, %v571
        %v604 = vadd.f32 %v458, %v572
        %v605 = vadd.f32 %v459, %v573
        %v606 = vadd.f32 %v460, %v574
        %v607 = vadd.f32 %v461, %v575
        %v608 = vadd.f32 %v462, %v576
        %v609 = vadd.f32 %v463, %v577
        %v610 = vadd.f32 %v464, %v578
        %v611 = vadd.f32 %v465, %v579
        %v612 = vadd.f32 %v466, %v580
        %v613 = vadd.f32 %v467, %v581
        %v614 = vadd.f32 %v468, %v582
        %v615 = vadd.f32 %v469, %v583
        %v616 = vadd.f32 %v470, %v584
        %v617 = vadd.f32 %v471, %v585
        %v618 = vadd.f32 %v472, %v586
        %v619 = vadd.f32 %v473, %v587
        %v620 = vadd.f32 %v474, %v588
        %v621 = vadd.f32 %v475, %v589
        %v622 = vadd.f32 %v476, %v590
        %v623 = vadd.f32 %v477, %v591
        %v624 = vadd.f32 %v478, %v592
        %v625 = vadd.f32 %v479, %v593
        %v626 = vadd.f32 %v480, %v594
        %v627 = vadd.f32 %v481, %v595
        %v628 = vadd.f32 %v482, %v596
        %v629 = vadd.f32 %v483, %v597
        %630 = vset.pattern.permute.xlu0 2
        %631 = vperm.xlu0 %630, %v337
        %v632 = vpop.permute.xlu0 %631
        %634 = vset.pattern.permute.xlu0 2
        %635 = vperm.xlu0 %634, %v338
        %v636 = vpop.permute.xlu0 %635
        %638 = vset.pattern.permute.xlu0 2
        %639 = vperm.xlu0 %638, %v339
        %v640 = vpop.permute.xlu0 %639
        %642 = vset.pattern.permute.xlu0 2
        %643 = vperm.xlu0 %642, %v340
        %v644 = vpop.permute.xlu0 %643
        %646 = vset.pattern.permute.xlu0 2
        %647 = vperm.xlu0 %646, %v341
        %v648 = vpop.permute.xlu0 %647
        %650 = vset.pattern.permute.xlu0 2
        %651 = vperm.xlu0 %650, %v342
        %v652 = vpop.permute.xlu0 %651
        %654 = vset.pattern.permute.xlu0 2
        %655 = vperm.xlu0 %654, %v343
        %v656 = vpop.permute.xlu0 %655
        %658 = vset.pattern.permute.xlu0 2
        %659 = vperm.xlu0 %658, %v344
        %v660 = vpop.permute.xlu0 %659
        %662 = vset.pattern.permute.xlu0 2
        %663 = vperm.xlu0 %662, %v345
        %v664 = vpop.permute.xlu0 %663
        %666 = vset.pattern.permute.xlu0 2
        %667 = vperm.xlu0 %666, %v346
        %v668 = vpop.permute.xlu0 %667
        %670 = vset.pattern.permute.xlu0 2
        %671 = vperm.xlu0 %670, %v347
        %v672 = vpop.permute.xlu0 %671
        %674 = vset.pattern.permute.xlu0 2
        %675 = vperm.xlu0 %674, %v348
        %v676 = vpop.permute.xlu0 %675
        %678 = vset.pattern.permute.xlu0 2
        %679 = vperm.xlu0 %678, %v349
        %v680 = vpop.permute.xlu0 %679
        %682 = vset.pattern.permute.xlu0 2
        %683 = vperm.xlu0 %682, %v350
        %v684 = vpop.permute.xlu0 %683
        %686 = vset.pattern.permute.xlu0 2
        %687 = vperm.xlu0 %686, %v351
        %v688 = vpop.permute.xlu0 %687
        %690 = vset.pattern.permute.xlu0 2
        %691 = vperm.xlu0 %690, %v352
        %v692 = vpop.permute.xlu0 %691
        %v694 = vlaneseq
        %v695 = vshrl.u32 %v694, 7
        %v696 = vsub.s32 2, %v695
        %v697 = vrot.slane %v336, %v696
        %v698 = vlaneseq
        %v699 = vshrl.u32 %v698, 7
        %v700 = vsub.s32 6, %v699
        %v701 = vrot.slane %v336, %v700
        %v704 = vlaneseq
        %v705 = vshrl.u32 %v704, 7
        %v706 = vsub.s32 2, %v705
        %v707 = vrot.slane %v697, %v706
        %v708 = vlaneseq
        %v709 = vshrl.u32 %v708, 7
        %v710 = vsub.s32 2, %v709
        %v711 = vrot.slane %v701, %v710
        %v712 = vmul.f32 %v632, %v707
        %v713 = vmul.f32 %v632, %v711
        %v714 = vmul.f32 %v636, %v707
        %v715 = vmul.f32 %v636, %v711
        %v716 = vmul.f32 %v640, %v707
        %v717 = vmul.f32 %v640, %v711
        %v718 = vmul.f32 %v644, %v707
        %v719 = vmul.f32 %v644, %v711
        %v720 = vmul.f32 %v648, %v707
        %v721 = vmul.f32 %v648, %v711
        %v722 = vmul.f32 %v652, %v707
        %v723 = vmul.f32 %v652, %v711
        %v724 = vmul.f32 %v656, %v707
        %v725 = vmul.f32 %v656, %v711
        %v726 = vmul.f32 %v660, %v707
        %v727 = vmul.f32 %v660, %v711
        %v728 = vmul.f32 %v664, %v707
        %v729 = vmul.f32 %v664, %v711
        %v730 = vmul.f32 %v668, %v707
        %v731 = vmul.f32 %v668, %v711
        %v732 = vmul.f32 %v672, %v707
        %v733 = vmul.f32 %v672, %v711
        %v734 = vmul.f32 %v676, %v707
        %v735 = vmul.f32 %v676, %v711
        %v736 = vmul.f32 %v680, %v707
        %v737 = vmul.f32 %v680, %v711
        %v738 = vmul.f32 %v684, %v707
        %v739 = vmul.f32 %v684, %v711
        %v740 = vmul.f32 %v688, %v707
        %v741 = vmul.f32 %v688, %v711
        %v742 = vmul.f32 %v692, %v707
        %v743 = vmul.f32 %v692, %v711
        %v744 = vadd.f32 %v598, %v712
        %v745 = vadd.f32 %v599, %v713
        %v746 = vadd.f32 %v600, %v714
        %v747 = vadd.f32 %v601, %v715
        %v748 = vadd.f32 %v602, %v716
        %v749 = vadd.f32 %v603, %v717
        %v750 = vadd.f32 %v604, %v718
        %v751 = vadd.f32 %v605, %v719
        %v752 = vadd.f32 %v606, %v720
        %v753 = vadd.f32 %v607, %v721
        %v754 = vadd.f32 %v608, %v722
        %v755 = vadd.f32 %v609, %v723
        %v756 = vadd.f32 %v610, %v724
        %v757 = vadd.f32 %v611, %v725
        %v758 = vadd.f32 %v612, %v726
        %v759 = vadd.f32 %v613, %v727
        %v760 = vadd.f32 %v614, %v728
        %v761 = vadd.f32 %v615, %v729
        %v762 = vadd.f32 %v616, %v730
        %v763 = vadd.f32 %v617, %v731
        %v764 = vadd.f32 %v618, %v732
        %v765 = vadd.f32 %v619, %v733
        %v766 = vadd.f32 %v620, %v734
        %v767 = vadd.f32 %v621, %v735
        %v768 = vadd.f32 %v622, %v736
        %v769 = vadd.f32 %v623, %v737
        %v770 = vadd.f32 %v624, %v738
        %v771 = vadd.f32 %v625, %v739
        %v772 = vadd.f32 %v626, %v740
        %v773 = vadd.f32 %v627, %v741
        %v774 = vadd.f32 %v628, %v742
        %v775 = vadd.f32 %v629, %v743
        %v776 = vld [vmem:[%s2] sm:$0xff]
        %v777 = vld [vmem:[%s2 + $0x8] sm:$0xff]
        %v778 = vld [vmem:[%s2 + $0x10] sm:$0xff]
        %v779 = vld [vmem:[%s2 + $0x18] sm:$0xff]
        %v780 = vld [vmem:[%s2 + $0x20] sm:$0xff]
        %v781 = vld [vmem:[%s2 + $0x28] sm:$0xff]
        %v782 = vld [vmem:[%s2 + $0x30] sm:$0xff]
        %v783 = vld [vmem:[%s2 + $0x38] sm:$0xff]
        %v784 = vld [vmem:[%s2 + $0x40] sm:$0xff]
        %v785 = vld [vmem:[%s2 + $0x48] sm:$0xff]
        %v786 = vld [vmem:[%s2 + $0x50] sm:$0xff]
        %v787 = vld [vmem:[%s2 + $0x58] sm:$0xff]
        %v788 = vld [vmem:[%s2 + $0x60] sm:$0xff]
        %v789 = vld [vmem:[%s2 + $0x68] sm:$0xff]
        %v790 = vld [vmem:[%s2 + $0x70] sm:$0xff]
        %v791 = vld [vmem:[%s2 + $0x78] sm:$0xff]
        %793 = vset.pattern.permute.xlu0 0
        %794 = vperm.xlu0 %793, %v776
        %v795 = vpop.permute.xlu0 %794
        %798 = vset.pattern.permute.xlu0 0
        %799 = vperm.xlu0 %798, %v777
        %v800 = vpop.permute.xlu0 %799
        %803 = vset.pattern.permute.xlu0 0
        %804 = vperm.xlu0 %803, %v778
        %v805 = vpop.permute.xlu0 %804
        %808 = vset.pattern.permute.xlu0 0
        %809 = vperm.xlu0 %808, %v779
        %v810 = vpop.permute.xlu0 %809
        %813 = vset.pattern.permute.xlu0 0
        %814 = vperm.xlu0 %813, %v780
        %v815 = vpop.permute.xlu0 %814
        %818 = vset.pattern.permute.xlu0 0
        %819 = vperm.xlu0 %818, %v781
        %v820 = vpop.permute.xlu0 %819
        %823 = vset.pattern.permute.xlu0 0
        %824 = vperm.xlu0 %823, %v782
        %v825 = vpop.permute.xlu0 %824
        %828 = vset.pattern.permute.xlu0 0
        %829 = vperm.xlu0 %828, %v783
        %v830 = vpop.permute.xlu0 %829
        %833 = vset.pattern.permute.xlu0 0
        %834 = vperm.xlu0 %833, %v784
        %v835 = vpop.permute.xlu0 %834
        %838 = vset.pattern.permute.xlu0 0
        %839 = vperm.xlu0 %838, %v785
        %v840 = vpop.permute.xlu0 %839
        %843 = vset.pattern.permute.xlu0 0
        %844 = vperm.xlu0 %843, %v786
        %v845 = vpop.permute.xlu0 %844
        %848 = vset.pattern.permute.xlu0 0
        %849 = vperm.xlu0 %848, %v787
        %v850 = vpop.permute.xlu0 %849
        %853 = vset.pattern.permute.xlu0 0
        %854 = vperm.xlu0 %853, %v788
        %v855 = vpop.permute.xlu0 %854
        %858 = vset.pattern.permute.xlu0 0
        %859 = vperm.xlu0 %858, %v789
        %v860 = vpop.permute.xlu0 %859
        %863 = vset.pattern.permute.xlu0 0
        %864 = vperm.xlu0 %863, %v790
        %v865 = vpop.permute.xlu0 %864
        %868 = vset.pattern.permute.xlu0 0
        %869 = vperm.xlu0 %868, %v791
        %v870 = vpop.permute.xlu0 %869
        %v872 = vadd.f32 %v744, %v795
        %v873 = vadd.f32 %v745, %v795
        %v874 = vadd.f32 %v746, %v800
        %v875 = vadd.f32 %v747, %v800
        %v876 = vadd.f32 %v748, %v805
        %v877 = vadd.f32 %v749, %v805
        %v878 = vadd.f32 %v750, %v810
        %v879 = vadd.f32 %v751, %v810
        %v880 = vadd.f32 %v752, %v815
        %v881 = vadd.f32 %v753, %v815
        %v882 = vadd.f32 %v754, %v820
        %v883 = vadd.f32 %v755, %v820
        %v884 = vadd.f32 %v756, %v825
        %v885 = vadd.f32 %v757, %v825
        %v886 = vadd.f32 %v758, %v830
        %v887 = vadd.f32 %v759, %v830
        %v888 = vadd.f32 %v760, %v835
        %v889 = vadd.f32 %v761, %v835
        %v890 = vadd.f32 %v762, %v840
        %v891 = vadd.f32 %v763, %v840
        %v892 = vadd.f32 %v764, %v845
        %v893 = vadd.f32 %v765, %v845
        %v894 = vadd.f32 %v766, %v850
        %v895 = vadd.f32 %v767, %v850
        %v896 = vadd.f32 %v768, %v855
        %v897 = vadd.f32 %v769, %v855
        %v898 = vadd.f32 %v770, %v860
        %v899 = vadd.f32 %v771, %v860
        %v900 = vadd.f32 %v772, %v865
        %v901 = vadd.f32 %v773, %v865
        %v902 = vadd.f32 %v774, %v870
        %v903 = vadd.f32 %v775, %v870
        %v904 = vmax.f32 %v872, 0.0
        %v905 = vmax.f32 %v873, 0.0
        %v906 = vmax.f32 %v874, 0.0
        %v907 = vmax.f32 %v875, 0.0
        %v908 = vmax.f32 %v876, 0.0
        %v909 = vmax.f32 %v877, 0.0
        %v910 = vmax.f32 %v878, 0.0
        %v911 = vmax.f32 %v879, 0.0
        %v912 = vmax.f32 %v880, 0.0
        %v913 = vmax.f32 %v881, 0.0
        %v914 = vmax.f32 %v882, 0.0
        %v915 = vmax.f32 %v883, 0.0
        %v916 = vmax.f32 %v884, 0.0
        %v917 = vmax.f32 %v885, 0.0
        %v918 = vmax.f32 %v886, 0.0
        %v919 = vmax.f32 %v887, 0.0
        %v920 = vmax.f32 %v888, 0.0
        %v921 = vmax.f32 %v889, 0.0
        %v922 = vmax.f32 %v890, 0.0
        %v923 = vmax.f32 %v891, 0.0
        %v924 = vmax.f32 %v892, 0.0
        %v925 = vmax.f32 %v893, 0.0
        %v926 = vmax.f32 %v894, 0.0
        %v927 = vmax.f32 %v895, 0.0
        %v928 = vmax.f32 %v896, 0.0
        %v929 = vmax.f32 %v897, 0.0
        %v930 = vmax.f32 %v898, 0.0
        %v931 = vmax.f32 %v899, 0.0
        %v932 = vmax.f32 %v900, 0.0
        %v933 = vmax.f32 %v901, 0.0
        %v934 = vmax.f32 %v902, 0.0
        %v935 = vmax.f32 %v903, 0.0
        %v936 = vld [vmem:[%s3] sm:$0xff]
        %v937 = vld [vmem:[%s3 + $0x8] sm:$0xff]
        %v938 = vld [vmem:[%s3 + $0x10] sm:$0xff]
        %v939 = vld [vmem:[%s3 + $0x18] sm:$0xff]
        %v940 = vld [vmem:[%s3 + $0x20] sm:$0xff]
        %v941 = vld [vmem:[%s3 + $0x28] sm:$0xff]
        %v942 = vld [vmem:[%s3 + $0x30] sm:$0xff]
        %v943 = vld [vmem:[%s3 + $0x38] sm:$0xff]
        %v944 = vld [vmem:[%s4] sm:$0xff]
        %v945 = vld [vmem:[%s4 + $0x8] sm:$0xff]
        %v946 = vld [vmem:[%s4 + $0x10] sm:$0xff]
        %v947 = vld [vmem:[%s4 + $0x18] sm:$0xff]
        %v948 = vld [vmem:[%s4 + $0x20] sm:$0xff]
        %v949 = vld [vmem:[%s4 + $0x28] sm:$0xff]
        %v950 = vld [vmem:[%s4 + $0x30] sm:$0xff]
        %v951 = vld [vmem:[%s4 + $0x38] sm:$0xff]
        %953 = vset.pattern.permute.xlu0 0
        %954 = vperm.xlu0 %953, %v944
        %v955 = vpop.permute.xlu0 %954
        %958 = vset.pattern.permute.xlu0 0
        %959 = vperm.xlu0 %958, %v945
        %v960 = vpop.permute.xlu0 %959
        %963 = vset.pattern.permute.xlu0 0
        %964 = vperm.xlu0 %963, %v946
        %v965 = vpop.permute.xlu0 %964
        %968 = vset.pattern.permute.xlu0 0
        %969 = vperm.xlu0 %968, %v947
        %v970 = vpop.permute.xlu0 %969
        %973 = vset.pattern.permute.xlu0 0
        %974 = vperm.xlu0 %973, %v948
        %v975 = vpop.permute.xlu0 %974
        %978 = vset.pattern.permute.xlu0 0
        %979 = vperm.xlu0 %978, %v949
        %v980 = vpop.permute.xlu0 %979
        %983 = vset.pattern.permute.xlu0 0
        %984 = vperm.xlu0 %983, %v950
        %v985 = vpop.permute.xlu0 %984
        %988 = vset.pattern.permute.xlu0 0
        %989 = vperm.xlu0 %988, %v951
        %v990 = vpop.permute.xlu0 %989
        %992 = vmatprep.subr.mxu0 %v905
        %993 = vmatpush1.msra.mxu0 %v904
        %994 = vmatprep.subr.mxu0 %v907
        %995 = vmatpush1.msra.mxu0 %v906
        %996 = vmatprep.subr.mxu0 %v909
        %997 = vmatpush1.msra.mxu0 %v908
        %998 = vmatprep.subr.mxu0 %v911
        %999 = vmatpush1.msra.mxu0 %v910
        %1000 = vmatprep.subr.mxu0 %v913
        %1001 = vmatpush1.msra.mxu0 %v912
        %1002 = vmatprep.subr.mxu0 %v915
        %1003 = vmatpush1.msra.mxu0 %v914
        %1004 = vmatprep.subr.mxu0 %v917
        %1005 = vmatpush1.msra.mxu0 %v916
        %1006 = vmatprep.subr.mxu0 %v919
        %1007 = vmatpush1.msra.mxu0 %v918
        %1008 = vmatprep.subr.mxu0 %v921
        %1009 = vmatpush1.msra.mxu0 %v920
        %1010 = vmatprep.subr.mxu0 %v923
        %1011 = vmatpush1.msra.mxu0 %v922
        %1012 = vmatprep.subr.mxu0 %v925
        %1013 = vmatpush1.msra.mxu0 %v924
        %1014 = vmatprep.subr.mxu0 %v927
        %1015 = vmatpush1.msra.mxu0 %v926
        %1016 = vmatprep.subr.mxu0 %v929
        %1017 = vmatpush1.msra.mxu0 %v928
        %1018 = vmatprep.subr.mxu0 %v931
        %1019 = vmatpush1.msra.mxu0 %v930
        %1020 = vmatprep.subr.mxu0 %v933
        %1021 = vmatpush1.msra.mxu0 %v932
        %1022 = vmatprep.subr.mxu0 %v935
        %1023 = vmatpush1.msra.mxu0 %v934
        %1024 = vmatprep.subr.mxu0 0.0
        %1025 = vmatpush1.msra.mxu0 0.0
        %1026 = vmatprep.subr.mxu0 0.0
        %1027 = vmatpush1.msra.mxu0 0.0
        %1028 = vmatprep.subr.mxu0 0.0
        %1029 = vmatpush1.msra.mxu0 0.0
        %1030 = vmatprep.subr.mxu0 0.0
        %1031 = vmatpush1.msra.mxu0 0.0
        %1032 = vmatprep.subr.mxu0 0.0
        %1033 = vmatpush1.msra.mxu0 0.0
        %1034 = vmatprep.subr.mxu0 0.0
        %1035 = vmatpush1.msra.mxu0 0.0
        %1036 = vmatprep.subr.mxu0 0.0
        %1037 = vmatpush1.msra.mxu0 0.0
        %1038 = vmatprep.subr.mxu0 0.0
        %1039 = vmatpush1.msra.mxu0 0.0
        %1040 = vmatprep.subr.mxu0 0.0
        %1041 = vmatpush1.msra.mxu0 0.0
        %1042 = vmatprep.subr.mxu0 0.0
        %1043 = vmatpush1.msra.mxu0 0.0
        %1044 = vmatprep.subr.mxu0 0.0
        %1045 = vmatpush1.msra.mxu0 0.0
        %1046 = vmatprep.subr.mxu0 0.0
        %1047 = vmatpush1.msra.mxu0 0.0
        %1048 = vmatprep.subr.mxu0 0.0
        %1049 = vmatpush1.msra.mxu0 0.0
        %1050 = vmatprep.subr.mxu0 0.0
        %1051 = vmatpush1.msra.mxu0 0.0
        %1052 = vmatprep.subr.mxu0 0.0
        %1053 = vmatpush1.msra.mxu0 0.0
        %1054 = vmatprep.subr.mxu0 0.0
        %1055 = vmatpush1.msra.mxu0 0.0
        %1056 = vmatprep.mubr.f32.mxu0 0.0
        %1057 = vmatmul.mubr.f32.gmra.mrb[0].mxu0 %v936
        %v1058 = vpop.f32.mrb[0].mxu0
        %v1059 = vadd.f32 %v955, %v1058
        %v1060 = vpop.f32.mrb[0].mxu0
        %v1061 = vadd.f32 %v955, %v1060
        %1062 = vmatprep.mubr.f32.mxu0 0.0
        %1063 = vmatmul.mubr.f32.gmra.mrb[0].mxu0 %v937
        %v1064 = vpop.f32.mrb[0].mxu0
        %v1065 = vadd.f32 %v960, %v1064
        %v1066 = vpop.f32.mrb[0].mxu0
        %v1067 = vadd.f32 %v960, %v1066
        %1068 = vmatprep.mubr.f32.mxu0 0.0
        %1069 = vmatmul.mubr.f32.gmra.mrb[0].mxu0 %v938
        %v1070 = vpop.f32.mrb[0].mxu0
        %v1071 = vadd.f32 %v965, %v1070
        %v1072 = vpop.f32.mrb[0].mxu0
        %v1073 = vadd.f32 %v965, %v1072
        %1074 = vmatprep.mubr.f32.mxu0 0.0
        %1075 = vmatmul.mubr.f32.gmra.mrb[0].mxu0 %v939
        %v1076 = vpop.f32.mrb[0].mxu0
        %v1077 = vadd.f32 %v970, %v1076
        %v1078 = vpop.f32.mrb[0].mxu0
        %v1079 = vadd.f32 %v970, %v1078
        %1080 = vmatprep.mubr.f32.mxu0 0.0
        %1081 = vmatmul.mubr.f32.gmra.mrb[0].mxu0 %v940
        %v1082 = vpop.f32.mrb[0].mxu0
        %v1083 = vadd.f32 %v975, %v1082
        %v1084 = vpop.f32.mrb[0].mxu0
        %v1085 = vadd.f32 %v975, %v1084
        %1086 = vmatprep.mubr.f32.mxu0 0.0
        %1087 = vmatmul.mubr.f32.gmra.mrb[0].mxu0 %v941
        %v1088 = vpop.f32.mrb[0].mxu0
        %v1089 = vadd.f32 %v980, %v1088
        %v1090 = vpop.f32.mrb[0].mxu0
        %v1091 = vadd.f32 %v980, %v1090
        %1092 = vmatprep.mubr.f32.mxu0 0.0
        %1093 = vmatmul.mubr.f32.gmra.mrb[0].mxu0 %v942
        %v1094 = vpop.f32.mrb[0].mxu0
        %v1095 = vadd.f32 %v985, %v1094
        %v1096 = vpop.f32.mrb[0].mxu0
        %v1097 = vadd.f32 %v985, %v1096
        %1098 = vmatprep.mubr.f32.mxu0 0.0
        %1099 = vmatmul.mubr.f32.gmra.mrb[0].mxu0 %v943
        %v1100 = vpop.f32.mrb[0].mxu0
        %v1101 = vadd.f32 %v990, %v1100
        %v1102 = vpop.f32.mrb[0].mxu0
        %v1103 = vadd.f32 %v990, %v1102
        %1104 = vdwg.mxu0
        %v1105 = vmax.f32 %v1059, 0.0
        %v1106 = vmax.f32 %v1061, 0.0
        %v1107 = vmax.f32 %v1065, 0.0
        %v1108 = vmax.f32 %v1067, 0.0
        %v1109 = vmax.f32 %v1071, 0.0
        %v1110 = vmax.f32 %v1073, 0.0
        %v1111 = vmax.f32 %v1077, 0.0
        %v1112 = vmax.f32 %v1079, 0.0
        %v1113 = vmax.f32 %v1083, 0.0
        %v1114 = vmax.f32 %v1085, 0.0
        %v1115 = vmax.f32 %v1089, 0.0
        %v1116 = vmax.f32 %v1091, 0.0
        %v1117 = vmax.f32 %v1095, 0.0
        %v1118 = vmax.f32 %v1097, 0.0
        %v1119 = vmax.f32 %v1101, 0.0
        %v1120 = vmax.f32 %v1103, 0.0
        %v1121 = vld [vmem:[%s5] sm:$0xff]
        %v1122 = vld [vmem:[%s5 + $0x8] sm:$0xff]
        %v1123 = vld [vmem:[%s5 + $0x10] sm:$0xff]
        %v1124 = vld [vmem:[%s5 + $0x18] sm:$0xff]
        %v1125 = vld [vmem:[%s6] sm:$0xff]
        %v1126 = vld [vmem:[%s6 + $0x8] sm:$0xff]
        %v1127 = vld [vmem:[%s6 + $0x10] sm:$0xff]
        %v1128 = vld [vmem:[%s6 + $0x18] sm:$0xff]
        %1130 = vset.pattern.permute.xlu0 0
        %1131 = vperm.xlu0 %1130, %v1125
        %v1132 = vpop.permute.xlu0 %1131
        %1135 = vset.pattern.permute.xlu0 0
        %1136 = vperm.xlu0 %1135, %v1126
        %v1137 = vpop.permute.xlu0 %1136
        %1140 = vset.pattern.permute.xlu0 0
        %1141 = vperm.xlu0 %1140, %v1127
        %v1142 = vpop.permute.xlu0 %1141
        %1145 = vset.pattern.permute.xlu0 0
        %1146 = vperm.xlu0 %1145, %v1128
        %v1147 = vpop.permute.xlu0 %1146
        %vm1149 = vcmask 523264
        %v1151 = vsel %vm1149, %v1121, 0
        %v1154 = vsel %vm1149, %v1122, 0
        %v1157 = vsel %vm1149, %v1123, 0
        %v1160 = vsel %vm1149, %v1124, 0
        %1162 = vmatprep.subr.mxu0 %v1106
        %1163 = vmatpush1.msra.mxu0 %v1105
        %1164 = vmatprep.subr.mxu0 %v1108
        %1165 = vmatpush1.msra.mxu0 %v1107
        %1166 = vmatprep.subr.mxu0 %v1110
        %1167 = vmatpush1.msra.mxu0 %v1109
        %1168 = vmatprep.subr.mxu0 %v1112
        %1169 = vmatpush1.msra.mxu0 %v1111
        %1170 = vmatprep.subr.mxu0 %v1114
        %1171 = vmatpush1.msra.mxu0 %v1113
        %1172 = vmatprep.subr.mxu0 %v1116
        %1173 = vmatpush1.msra.mxu0 %v1115
        %1174 = vmatprep.subr.mxu0 %v1118
        %1175 = vmatpush1.msra.mxu0 %v1117
        %1176 = vmatprep.subr.mxu0 %v1120
        %1177 = vmatpush1.msra.mxu0 %v1119
        %1178 = vmatprep.subr.mxu0 0.0
        %1179 = vmatpush1.msra.mxu0 0.0
        %1180 = vmatprep.subr.mxu0 0.0
        %1181 = vmatpush1.msra.mxu0 0.0
        %1182 = vmatprep.subr.mxu0 0.0
        %1183 = vmatpush1.msra.mxu0 0.0
        %1184 = vmatprep.subr.mxu0 0.0
        %1185 = vmatpush1.msra.mxu0 0.0
        %1186 = vmatprep.subr.mxu0 0.0
        %1187 = vmatpush1.msra.mxu0 0.0
        %1188 = vmatprep.subr.mxu0 0.0
        %1189 = vmatpush1.msra.mxu0 0.0
        %1190 = vmatprep.subr.mxu0 0.0
        %1191 = vmatpush1.msra.mxu0 0.0
        %1192 = vmatprep.subr.mxu0 0.0
        %1193 = vmatpush1.msra.mxu0 0.0
        %1194 = vmatprep.subr.mxu0 0.0
        %1195 = vmatpush1.msra.mxu0 0.0
        %1196 = vmatprep.subr.mxu0 0.0
        %1197 = vmatpush1.msra.mxu0 0.0
        %1198 = vmatprep.subr.mxu0 0.0
        %1199 = vmatpush1.msra.mxu0 0.0
        %1200 = vmatprep.subr.mxu0 0.0
        %1201 = vmatpush1.msra.mxu0 0.0
        %1202 = vmatprep.subr.mxu0 0.0
        %1203 = vmatpush1.msra.mxu0 0.0
        %1204 = vmatprep.subr.mxu0 0.0
        %1205 = vmatpush1.msra.mxu0 0.0
        %1206 = vmatprep.subr.mxu0 0.0
        %1207 = vmatpush1.msra.mxu0 0.0
        %1208 = vmatprep.subr.mxu0 0.0
        %1209 = vmatpush1.msra.mxu0 0.0
        %1210 = vmatprep.subr.mxu0 0.0
        %1211 = vmatpush1.msra.mxu0 0.0
        %1212 = vmatprep.subr.mxu0 0.0
        %1213 = vmatpush1.msra.mxu0 0.0
        %1214 = vmatprep.subr.mxu0 0.0
        %1215 = vmatpush1.msra.mxu0 0.0
        %1216 = vmatprep.subr.mxu0 0.0
        %1217 = vmatpush1.msra.mxu0 0.0
        %1218 = vmatprep.subr.mxu0 0.0
        %1219 = vmatpush1.msra.mxu0 0.0
        %1220 = vmatprep.subr.mxu0 0.0
        %1221 = vmatpush1.msra.mxu0 0.0
        %1222 = vmatprep.subr.mxu0 0.0
        %1223 = vmatpush1.msra.mxu0 0.0
        %1224 = vmatprep.subr.mxu0 0.0
        %1225 = vmatpush1.msra.mxu0 0.0
        %1226 = vmatprep.mubr.f32.mxu0 0.0
        %1227 = vmatmul.mubr.f32.gmra.mrb[0].mxu0 %v1151
        %v1228 = vpop.f32.mrb[0].mxu0
        %v1229 = vadd.f32 %v1132, %v1228
        %v1230 = vpop.f32.mrb[0].mxu0
        %v1231 = vadd.f32 %v1132, %v1230
        %1232 = vmatprep.mubr.f32.mxu0 0.0
        %1233 = vmatmul.mubr.f32.gmra.mrb[0].mxu0 %v1154
        %v1234 = vpop.f32.mrb[0].mxu0
        %v1235 = vadd.f32 %v1137, %v1234
        %v1236 = vpop.f32.mrb[0].mxu0
        %v1237 = vadd.f32 %v1137, %v1236
        %1238 = vmatprep.mubr.f32.mxu0 0.0
        %1239 = vmatmul.mubr.f32.gmra.mrb[0].mxu0 %v1157
        %v1240 = vpop.f32.mrb[0].mxu0
        %v1241 = vadd.f32 %v1142, %v1240
        %v1242 = vpop.f32.mrb[0].mxu0
        %v1243 = vadd.f32 %v1142, %v1242
        %1244 = vmatprep.mubr.f32.mxu0 0.0
        %1245 = vmatmul.mubr.f32.gmra.mrb[0].mxu0 %v1160
        %v1246 = vpop.f32.mrb[0].mxu0
        %v1247 = vadd.f32 %v1147, %v1246
        %v1248 = vpop.f32.mrb[0].mxu0
        %v1249 = vadd.f32 %v1147, %v1248
        %1250 = vdwg.mxu0
        %v1251 = vmax.f32 %v1229, 0.0
        %v1252 = vmax.f32 %v1231, 0.0
        %v1253 = vmax.f32 %v1235, 0.0
        %v1254 = vmax.f32 %v1237, 0.0
        %v1255 = vmax.f32 %v1241, 0.0
        %v1256 = vmax.f32 %v1243, 0.0
        %v1257 = vmax.f32 %v1247, 0.0
        %v1258 = vmax.f32 %v1249, 0.0
        %v1259 = vld [vmem:[%s7] sm:$0xff]
        %v1260 = vld [vmem:[%s7 + $0x8] sm:$0xff]
        %v1261 = vld [vmem:[%s7 + $0x10] sm:$0xff]
        %v1262 = vld [vmem:[%s7 + $0x18] sm:$0xff]
        %1264 = vset.pattern.permute.xlu0 0
        %1265 = vperm.xlu0 %1264, %v1259
        %v1266 = vpop.permute.xlu0 %1265
        %1269 = vset.pattern.permute.xlu0 0
        %1270 = vperm.xlu0 %1269, %v1260
        %v1271 = vpop.permute.xlu0 %1270
        %1274 = vset.pattern.permute.xlu0 0
        %1275 = vperm.xlu0 %1274, %v1261
        %v1276 = vpop.permute.xlu0 %1275
        %1279 = vset.pattern.permute.xlu0 0
        %1280 = vperm.xlu0 %1279, %v1262
        %v1281 = vpop.permute.xlu0 %1280
        %v1283 = vmul.f32 %v1251, %v1266
        %v1284 = vmul.f32 %v1252, %v1266
        %v1285 = vmul.f32 %v1253, %v1271
        %v1286 = vmul.f32 %v1254, %v1271
        %v1287 = vmul.f32 %v1255, %v1276
        %v1288 = vmul.f32 %v1256, %v1276
        %v1289 = vmul.f32 %v1257, %v1281
        %v1290 = vmul.f32 %v1258, %v1281
        %v1291 = vadd.f32 %v1283, %v1285
        %v1292 = vadd.f32 %v1291, %v1287
        %v1293 = vadd.f32 %v1292, %v1289
        %v1294 = vrot.slane %v1293, 4
        %v1295 = vadd.f32 %v1293, %v1294
        %v1296 = vrot.slane %v1295, 2
        %v1297 = vadd.f32 %v1295, %v1296
        %v1298 = vrot.slane %v1297, 1
        %v1299 = vadd.f32 %v1297, %v1298
        %v1300 = vadd.f32 %v1284, %v1286
        %v1301 = vadd.f32 %v1300, %v1288
        %v1302 = vadd.f32 %v1301, %v1290
        %v1303 = vrot.slane %v1302, 4
        %v1304 = vadd.f32 %v1302, %v1303
        %v1305 = vrot.slane %v1304, 2
        %v1306 = vadd.f32 %v1304, %v1305
        %v1307 = vrot.slane %v1306, 1
        %v1308 = vadd.f32 %v1306, %v1307
        %v1309 = vld [vmem:[#allocation2] sm:$0x1]
        %1311 = vset.pattern.permute.xlu0 0
        %1312 = vperm.xlu0 %1311, %v1309
        %v1313 = vpop.permute.xlu0 %1312
        %v1315 = vlaneseq
        %v1316 = vshrl.u32 %v1315, 7
        %v1317 = vsub.s32 0, %v1316
        %v1318 = vrot.slane %v1313, %v1317
        %v1319 = vadd.f32 %v1299, %v1318
        %v1320 = vadd.f32 %v1308, %v1318
        %v1323 = vcombine.low %v1319, %v1320
        %v1325 = vunpack.c.l.s4 1966171168
        %v1326 = vunpack.c.0.s8 %v1325
        %v1327 = vlaneseq
        %v1328 = vshrl.u32 %v1327, 7
        %v1329 = vsub.s32 %v1326, %v1328
        %v1330 = vrot.slane %v1323, %v1329
        %v1332 = vunpack.c.l.s4 1966171168
        %v1333 = vunpack.c.0.s8 %v1332
        %v1334 = vlaneseq
        %v1335 = vshrl.u32 %v1334, 7
        %v1336 = vsub.s32 %v1333, %v1335
        %v1337 = vrot.slane %v1330, %v1336
        %v1339 = vlaneseq
        %vm1340 = vcmp.ge.s32.totalorder %v1339, 0
        %vm1341 = vcmp.lt.s32.totalorder %v1339, 256
        %vm1342 = vmand %vm1340, %vm1341
        %1343 = vst.msk [vmem:[%s328] sm:$0x3] %vm1342, %v1337
        %s1344 = sand.u32 %s227, 1
        %s1345 = scalar_lea.sflag [#allocation4], %s1344
        %s1346 = sand.u32 %s227, 1
        %s1347 = smul.addr %s1346, 2
        %s1348 = scalar_lea.vmem [#allocation3], %s1347
        // Predicated region
        $region57: #{tpu_custom_call.1} parent=55 // pred_check
          %p1349 = pneg %p237
        $region58: #{tpu_custom_call.1} parent=55 // pred_check_branch
          %1351 = sbr.rel (%p1349) target = $region60
        $region59: #{tpu_custom_call.1} parent=55 // pred_region
          %s1352 = smul.u32 2, %s25
          %s1354 = ssub.s32 32, 32
          %1355 = vsyncadd %s1345, %s1354
          %s1356 = smul.addr %s1352, 16
          %s1357 = scalar_lea.hbm %s9, %s1356
          %s1359 = sshll.u32 %s1348, 4
          %s1360 = int_to_ptr.vmem [resolvable:$true] %s1359
          %1362 = dma.vmem_to_hbm [thread:$0]  %s1360, 32, %s1357, %s1345
        $region60: #{tpu_custom_call.1} parent=55 // pred_fallthru
          _
      $region56: #{tpu_custom_call.1} parent=5 // pred_fallthru
        _
      %p1363 = scmp.le.s32.totalorder 2, %s20
      // Predicated region
      $region61: #{tpu_custom_call.1} parent=5 // pred_check
        %p1364 = pneg %p1363
      $region62: #{tpu_custom_call.1} parent=5 // pred_check_branch
        %1366 = sbr.rel (%p1364) target = $region64
      $region63: #{tpu_custom_call.1} parent=5 // pred_region
        %s1367 = ssub.s32 %s20, 2
        // Predicated region
        $region65: #{tpu_custom_call.1} parent=63 // pred_check
          %p1368 = pneg %p243
        $region66: #{tpu_custom_call.1} parent=63 // pred_check_branch
          %1370 = sbr.rel (%p1368) target = $region68
        $region67: #{tpu_custom_call.1} parent=63 // pred_region
          %s1371 = sand.u32 %s228, 1
          %s1372 = scalar_lea.sflag [#allocation4], %s1371
          %s1373 = sand.u32 %s228, 1
          %s1374 = smul.addr %s1373, 2
          %s1375 = scalar_lea.vmem [#allocation3], %s1374
          %1376 = dma.done %s1372, 32
        $region68: #{tpu_custom_call.1} parent=63 // pred_fallthru
          _
      $region64: #{tpu_custom_call.1} parent=5 // pred_fallthru
        _
    $region6: #{tpu_custom_call.1} parent=1 // loop_footer
      %s24 = sadd.s32 1, %s20
    $region7: #{tpu_custom_call.1} parent=1 // loop_footer_branch
      %19 = sbr.rel target = $region3
    $region8: #{tpu_custom_call.1} parent=1 // loop_exit
      _
    %1377 = vsyncpa [#allocation4], 1
    %s1378 = scalar_lea.sflag [#allocation4], 1
    %1379 = vsyncpa %s1378, 1

</llo_original>
